<compile_context>
chip_gen: v6e
topology: v6e:2x2x1
jax: 0.10.0
libtpu: 0.0.40
codegen_flags: <defaults>
</compile_context>

<pallas_src>
import functools

import jax
import jax.numpy as jnp
from jax import lax
from jax.experimental import pallas as pl
from jax.experimental.pallas import tpu as pltpu


# VMEM tile budgets (bytes); conservative for v7x (64 MiB physical VMEM per TC).
_FUSED_TILE_BUDGET = 6 * 1024 * 1024    # resident (b_tile, C, T) tile (in + out)
_REDUCE_TILE_BUDGET = 8 * 1024 * 1024   # phase-1 tile (input stream only)
_APPLY_TILE_BUDGET = 4 * 1024 * 1024    # phase-2 tile (in + out double-buffered)


def _fms_fused_kernel(x_ref, wt_ref, b_ref, o_ref, *, total_t):
    """Single pass on a resident tile: time-mean -> linear -> sigmoid -> x*y + y."""
    x = x_ref[...]                                               # (b_tile, C, T)
    mean = jnp.sum(x.astype(jnp.float32), axis=-1) * (1.0 / float(total_t))
    z = jnp.dot(mean, wt_ref[...], preferred_element_type=jnp.float32) + b_ref[...]
    y = jax.nn.sigmoid(z)[:, :, None]                            # (b_tile, C, 1) f32
    o_ref[...] = (x * y + y).astype(o_ref.dtype)


def _fms_reduce_kernel(x_ref, mean_ref, *, total_t, t_tile):
    """Phase 1: accumulate per-(B, C) time sums into the resident f32 output block."""
    t = pl.program_id(1)
    last = pl.num_programs(1) - 1

    @pl.when(t == 0)
    def _():
        mean_ref[...] = jnp.zeros_like(mean_ref)

    rem = total_t % t_tile
    if rem == 0:
        mean_ref[...] += jnp.sum(x_ref[...].astype(jnp.float32), axis=-1)
    else:
        # Steady state: unmasked accumulate; only the padded last tile is masked.
        @pl.when(t != last)
        def _():
            mean_ref[...] += jnp.sum(x_ref[...].astype(jnp.float32), axis=-1)

        @pl.when(t == last)
        def _():
            lane = lax.broadcasted_iota(jnp.int32, (1, 1, t_tile), 2)
            xm = jnp.where(lane < rem, x_ref[...].astype(jnp.float32), 0.0)
            mean_ref[...] += jnp.sum(xm, axis=-1)

    @pl.when(t == last)
    def _():
        mean_ref[...] *= 1.0 / float(total_t)


def _fms_apply_kernel(x_ref, y_ref, o_ref):
    """Phase 2: o = x * y + y with the (B, C) gate broadcast over time."""
    y = y_ref[...][:, :, None]                                   # (b_tile, C, 1) f32
    o_ref[...] = (x_ref[...] * y + y).astype(o_ref.dtype)


def _pick_time_tile(T, row_bytes, budget):
    """Largest time tile (either == T, or a multiple of 128) fitting `budget` bytes."""
    if T * row_bytes <= budget:
        return T
    t = (budget // row_bytes) // 128 * 128
    return int(max(128, min(t, 2048)))


def fms_forward(x, weight, bias, *,
                vmem_limit_bytes=48 * 1024 * 1024,
                fused_tile_budget=_FUSED_TILE_BUDGET,
                reduce_t_tile=None, apply_t_tile=None,
                donate_x=False):
    """x: (B, C, T); weight: (C, C) PyTorch Linear (out x in); bias: (C,) -> (B, C, T)."""
    B, C, T = x.shape
    itemsize = jnp.dtype(x.dtype).itemsize

    # Pre-transpose the Linear weight once at trace time (no in-kernel transpose).
    wt = weight.T.astype(jnp.float32)                            # (C_in, C_out)
    b2 = bias.reshape(1, C).astype(jnp.float32)

    row_bytes = C * T * itemsize                                 # one batch row, all T
    io_alias = {0: 0} if donate_x else {}

    # ---------------- Fused single-pass path: 1x read + 1x write of x. ----------------
    use_fused = (fused_tile_budget
                 and row_bytes <= fused_tile_budget
                 and reduce_t_tile is None and apply_t_tile is None)
    if use_fused:
        b_tile = max(1, min(B, fused_tile_budget // row_bytes))
        # Keep >= 2 blocks on the parallel batch axis so both v7x TCs get work.
        if B >= 2 and -(-B // b_tile) < 2:
            b_tile = -(-B // 2)
        grid_b = pl.cdiv(B, b_tile)
        return pl.pallas_call(
            functools.partial(_fms_fused_kernel, total_t=T),
            out_shape=jax.ShapeDtypeStruct((B, C, T), x.dtype),
            grid_spec=pltpu.PrefetchScalarGridSpec(
                num_scalar_prefetch=0,
                grid=(grid_b,),
                in_specs=[
                    pl.BlockSpec((b_tile, C, T), lambda b: (b, 0, 0)),
                    pl.BlockSpec((C, C), lambda b: (0, 0)),
                    pl.BlockSpec((1, C), lambda b: (0, 0)),
                ],
                out_specs=pl.BlockSpec((b_tile, C, T), lambda b: (b, 0, 0)),
            ),
            compiler_params=pltpu.CompilerParams(
                dimension_semantics=("parallel",),
                vmem_limit_bytes=vmem_limit_bytes,
            ),
            input_output_aliases=io_alias,
        )(x, wt, b2)

    # ------------- Two-phase fallback (very long T): reduce -> gate -> apply. -------------
    b_tile = B if B <= 8 else 8        # (B, C) block: b_tile multiple of 8 or == B
    # TODO(synk): when B <= 8 on v7x, phase 1 uses a single TensorCore; split the T
    # reduction into per-core partial sums if that phase ever dominates.
    grid_b = pl.cdiv(B, b_tile)

    t1 = reduce_t_tile or _pick_time_tile(T, b_tile * C * itemsize, _REDUCE_TILE_BUDGET)
    t2 = apply_t_tile or _pick_time_tile(T, b_tile * C * itemsize, _APPLY_TILE_BUDGET)
    assert t1 == T or t1 % 128 == 0
    assert t2 == T or t2 % 128 == 0

    # Phase 1: per-(B, C) time mean (f32).
    mean = pl.pallas_call(
        functools.partial(_fms_reduce_kernel, total_t=T, t_tile=t1),
        out_shape=jax.ShapeDtypeStruct((B, C), jnp.float32),
        grid_spec=pltpu.PrefetchScalarGridSpec(
            num_scalar_prefetch=0,
            grid=(grid_b, pl.cdiv(T, t1)),
            in_specs=[pl.BlockSpec((b_tile, C, t1), lambda b, t: (b, 0, t))],
            out_specs=pl.BlockSpec((b_tile, C), lambda b, t: (b, 0)),
        ),
        compiler_params=pltpu.CompilerParams(
            dimension_semantics=("parallel", "arbitrary"),
            vmem_limit_bytes=vmem_limit_bytes,
        ),
    )(x)

    # Tiny (B, C) x (C, C) gate: negligible work, keep it in plain XLA.
    y = jax.nn.sigmoid(mean @ wt + b2)

    # Phase 2: stream x and apply x * y + y (native dtype in/out, lane-dense tiles).
    return pl.pallas_call(
        _fms_apply_kernel,
        out_shape=jax.ShapeDtypeStruct((B, C, T), x.dtype),
        grid_spec=pltpu.PrefetchScalarGridSpec(
            num_scalar_prefetch=0,
            grid=(grid_b, pl.cdiv(T, t2)),
            in_specs=[
                pl.BlockSpec((b_tile, C, t2), lambda b, t: (b, 0, t)),
                pl.BlockSpec((b_tile, C), lambda b, t: (b, 0)),
            ],
            out_specs=pl.BlockSpec((b_tile, C, t2), lambda b, t: (b, 0, t)),
        ),
        compiler_params=pltpu.CompilerParams(
            dimension_semantics=("parallel", "parallel"),
            vmem_limit_bytes=vmem_limit_bytes,
        ),
        input_output_aliases=io_alias,
    )(x, y)


def fms_reference(x, weight, bias):
    y = jnp.mean(x.astype(jnp.float32), axis=-1)
    y = y @ weight.T.astype(jnp.float32) + bias.astype(jnp.float32)
    y = jax.nn.sigmoid(y)[:, :, None]
    return (x * y + y).astype(x.dtype)


if __name__ == "__main__":
    keys = jax.random.split(jax.random.PRNGKey(0), 4)

    def make_inputs(key, B, C, T):
        kx, kw, kb = jax.random.split(key, 3)
        bound = 1.0 / (C ** 0.5)
        x = jax.random.normal(kx, (B, C, T), dtype=jnp.float32)
        w = jax.random.uniform(kw, (C, C), jnp.float32, -bound, bound)
        b = jax.random.uniform(kb, (C,), jnp.float32, -bound, bound)
        return x, w, b

    # Case 1: toy shape from the module spec -> fused path, grid_b = 2.
    x, w, b = make_inputs(keys[0], 2, 4, 16)
    out = jax.block_until_ready(fms_forward(x, w, b))
    assert out.shape == x.shape
    assert jnp.allclose(out, fms_reference(x, w, b), atol=1e-5, rtol=1e-5)

    # Case 2: two-phase path, divisible T (accumulator pipeline, no tail mask).
    x, w, b = make_inputs(keys[1], 2, 4, 640)
    out = jax.block_until_ready(
        fms_forward(x, w, b, fused_tile_budget=0, reduce_t_tile=128, apply_t_tile=128))
    assert jnp.allclose(out, fms_reference(x, w, b), atol=1e-5, rtol=1e-5)

    # Case 3: two-phase path, partial last T tile (tail mask / true-T mean).
    x, w, b = make_inputs(keys[2], 2, 4, 600)
    out = jax.block_until_ready(
        fms_forward(x, w, b, fused_tile_budget=0, reduce_t_tile=128, apply_t_tile=128))
    assert jnp.allclose(out, fms_reference(x, w, b), atol=1e-5, rtol=1e-5)

    # Case 4: fused path with a partial batch block (B=3 split over 2 blocks).
    x, w, b = make_inputs(keys[3], 3, 8, 160)
    out = jax.block_until_ready(fms_forward(x, w, b))
    assert jnp.allclose(out, fms_reference(x, w, b), atol=1e-5, rtol=1e-5)

    print("KERNEL_OK")
</pallas_src>

<mosaic_0001>
module attributes {stable_mosaic.version = 11 : i64} {
  func.func @_fms_fused_kernel(%arg0: i32, %arg1: memref<1x4x16xf32, #tpu.memory_space<vmem>>, %arg2: memref<4x4xf32, #tpu.memory_space<vmem>>, %arg3: memref<1x4xf32, #tpu.memory_space<vmem>>, %arg4: memref<1x4x16xf32, #tpu.memory_space<vmem>>) attributes {dimension_semantics = [#tpu.dimension_semantics<parallel>], iteration_bounds = array<i64: 2>, scalar_prefetch = 0 : i64, scratch_operands = 0 : i64, tpu.core_type = #tpu.core_type<tc>, window_params = [{transform_indices = @transform_0, window_bounds = array<i64: 1, 4, 16>}, {pipeline_mode = #tpu.pipeline_mode<synchronous>, transform_indices = @transform_1, window_bounds = array<i64: 4, 4>}, {pipeline_mode = #tpu.pipeline_mode<synchronous>, transform_indices = @transform_2, window_bounds = array<i64: 1, 4>}, {transform_indices = @transform_3, window_bounds = array<i64: 1, 4, 16>}]} {
    %c0 = arith.constant 0 : index
    %c0_0 = arith.constant 0 : index
    %c0_1 = arith.constant 0 : index
    %0 = vector.load %arg1[%c0, %c0_0, %c0_1] : memref<1x4x16xf32, #tpu.memory_space<vmem>>, vector<1x4x16xf32>
    %cst = arith.constant dense<0.000000e+00> : vector<1x4xf32>
    %1 = vector.multi_reduction <add>, %0, %cst [2] : vector<1x4x16xf32> to vector<1x4xf32>
    %cst_2 = arith.constant 6.250000e-02 : f32
    %2 = vector.broadcast %cst_2 : f32 to vector<1x4xf32>
    %3 = arith.mulf %1, %2 : vector<1x4xf32>
    %c0_3 = arith.constant 0 : index
    %c0_4 = arith.constant 0 : index
    %4 = vector.load %arg2[%c0_3, %c0_4] : memref<4x4xf32, #tpu.memory_space<vmem>>, vector<4x4xf32>
    %cst_5 = arith.constant dense<0.000000e+00> : vector<1x4xf32>
    %5 = tpu.matmul %3, %4, %cst_5 {dimension_numbers = #tpu.dot_dimension_numbers<[1], [0], [0], [1], [0, 0, 1, 1], [], []>} : vector<1x4xf32>, vector<4x4xf32>, vector<1x4xf32> -> vector<1x4xf32>
    %c0_6 = arith.constant 0 : index
    %c0_7 = arith.constant 0 : index
    %6 = vector.load %arg3[%c0_6, %c0_7] : memref<1x4xf32, #tpu.memory_space<vmem>>, vector<1x4xf32>
    %7 = arith.addf %5, %6 : vector<1x4xf32>
    %8 = arith.negf %7 : vector<1x4xf32>
    %9 = math.exp %8 : vector<1x4xf32>
    %cst_8 = arith.constant 1.000000e+00 : f32
    %10 = vector.broadcast %cst_8 : f32 to vector<1x4xf32>
    %11 = arith.addf %10, %9 : vector<1x4xf32>
    %12 = arith.divf %10, %11 : vector<1x4xf32>
    %13 = vector.shape_cast %12 : vector<1x4xf32> to vector<1x4x1xf32>
    %14 = vector.broadcast %13 : vector<1x4x1xf32> to vector<1x4x16xf32>
    %15 = arith.mulf %0, %14 : vector<1x4x16xf32>
    %16 = vector.broadcast %13 : vector<1x4x1xf32> to vector<1x4x16xf32>
    %17 = arith.addf %15, %16 : vector<1x4x16xf32>
    %c0_9 = arith.constant 0 : index
    %c0_10 = arith.constant 0 : index
    %c0_11 = arith.constant 0 : index
    %18 = vector.load %arg4[%c0_9, %c0_10, %c0_11] : memref<1x4x16xf32, #tpu.memory_space<vmem>>, vector<1x4x16xf32>
    tpu.vector_store %arg4[%c0_9, %c0_10, %c0_11], %17 {strides = array<i32>} : memref<1x4x16xf32, #tpu.memory_space<vmem>>, vector<1x4x16xf32>,
    return
  }
  func.func @transform_0(%arg0: i32) -> (i32, i32, i32) {
    %c0_i32 = arith.constant 0 : i32
    %c0_i32_0 = arith.constant 0 : i32
    %c0_i32_1 = arith.constant 0 : i32
    return %arg0, %c0_i32, %c0_i32_0 : i32, i32, i32
  }
  func.func @transform_1(%arg0: i32) -> (i32, i32) {
    %c0_i32 = arith.constant 0 : i32
    %c0_i32_0 = arith.constant 0 : i32
    %c0_i32_1 = arith.constant 0 : i32
    return %c0_i32, %c0_i32_0 : i32, i32
  }
  func.func @transform_2(%arg0: i32) -> (i32, i32) {
    %c0_i32 = arith.constant 0 : i32
    %c0_i32_0 = arith.constant 0 : i32
    %c0_i32_1 = arith.constant 0 : i32
    return %c0_i32, %c0_i32_0 : i32, i32
  }
  func.func @transform_3(%arg0: i32) -> (i32, i32, i32) {
    %c0_i32 = arith.constant 0 : i32
    %c0_i32_0 = arith.constant 0 : i32
    %c0_i32_1 = arith.constant 0 : i32
    return %arg0, %c0_i32, %c0_i32_0 : i32, i32, i32
  }
}

</mosaic_0001>

<llo_original>
// kernel: tpu_custom_call.1
$region0: #{tpu_custom_call.1}
  #allocation0 [shape = 'u32[]', space=smem, size = 0x4, offset = 0x4, fixed_abs, tag = 'smem constant byte address 0x4 - core index']
  #allocation1 [shape = 'u32[144,128]{1,0:T(1,128)}', space=vmem, size = 0x12000, scoped, tag = 'internal scratch']
  %s0 = inlined_call_operand.hbm [shape: f32[2,4,16], index: 0, kind: input, shape index: {}]
  %s1 = inlined_call_operand.hbm [shape: f32[4,4], index: 1, kind: input, shape index: {}]
  %s2 = inlined_call_operand.vmem [shape: f32[1,4], index: 2, kind: input, shape index: {}]
  %s3 = inlined_call_operand.hbm [shape: f32[2,4,16], index: 3, kind: output, shape index: {}]
  %s4 = sld [smem:[#allocation0]]
  $region53: #{tpu_custom_call.1} parent=0
    _
  %s6 = ssub.s32 1, %s4
  %s7 = scalar_select 0, %s6, %s4
  $region1: #{tpu_custom_call.1} parent=0
    #allocation2 [shape = 'u8[4096]{0}', space=vmem, size = 0x1000, scoped, tag = 'input window, operand 0']
    #allocation3 [shape = 's32[2]{0}', space=sflag, size = 0x8, scoped, tag = 'scoped memory for tpu_custom_call.1']
    #allocation4 [shape = 's32[2]{0}', space=sflag, size = 0x8, scoped, tag = 'scoped memory for tpu_custom_call.1']
    #allocation5 [shape = 'u8[2048]{0}', space=vmem, size = 0x800, scoped, tag = 'input window, operand 1, single buffered']
    #allocation6 [shape = 's32[1]{0}', space=sflag, size = 0x4, scoped, tag = 'scoped memory for tpu_custom_call.1']
    #allocation7 [shape = 'u8[4096]{0}', space=vmem, size = 0x1000, scoped, tag = 'output window, operand 0']
    %8 = vsyncpa [#allocation3], 0
    %s9 = scalar_lea.sflag [#allocation3], 1
    %10 = vsyncpa %s9, 0
    %11 = vsyncpa [#allocation6], 0
    %12 = vsyncpa [#allocation4], 0
    %s13 = scalar_lea.sflag [#allocation4], 1
    %14 = vsyncpa %s13, 0
    loop: start=0, step=1, limit=4
    $region2: #{tpu_custom_call.1} parent=1 // loop_pre_header
      _
    $region3: #{tpu_custom_call.1} parent=1 // loop_header
      %s16 = sphi 0, %s20
      %p17 = scmp.ge.s32.totalorder %s16, 4
      %s26 = sphi 0, %s28
      %s29 = sphi 0, %s26
      %s30 = sphi 0, %s29
      %s46 = sphi 0, %s30
      %s50 = sphi 0, %s50
      %s52 = sphi 0, %s50
      %s53 = sphi 0, %s52
      %s67 = sphi 0, %s53
      %s71 = sphi 0, %s71
      %s73 = sphi 0, %s71
      %s74 = sphi 0, %s73
      %s88 = sphi 0, %s74
      %s94 = sphi 0, %s96
      %s97 = sphi 0, %s94
      %s98 = sphi 0, %s97
      %s114 = sphi 0, %s98
    $region4: #{tpu_custom_call.1} parent=1 // loop_header_branch
      %19 = sbr.rel (%p17) target = $region8
    $region5: #{tpu_custom_call.1} parent=1 // loop_body
      %s21 = ssub.s32 %s16, 1
      %s22 = ssub.s32 %s16, 2
      %s23 = sadd.s32 %s16, 1
      %s24 = ssub.s32 %s16, %s23
      %p25 = scmp.eq.s32.totalorder %s24, 0
      %s27 = sadd.s32 %s26, 1
      %s28 = scalar_select %p25, %s26, %s27
      %p31 = pneg %p25
      %p32 = scmp.eq.s32.totalorder %s16, 1
      %p33 = por %p31, %p32
      %p34 = scmp.ne.s32.totalorder %s26, %s29
      %p35 = scmp.eq.s32.totalorder %s16, 0
      %p36 = por %p34, %p35
      %p37 = scmp.ne.s32.totalorder %s26, %s29
      %p38 = scmp.eq.s32.totalorder %s21, 1
      %p39 = por %p37, %p38
      %p40 = scmp.ne.s32.totalorder %s29, %s30
      %p41 = scmp.eq.s32.totalorder %s21, 0
      %p42 = por %p40, %p41
      %p43 = scmp.ne.s32.totalorder %s29, %s30
      %p44 = scmp.eq.s32.totalorder %s22, 1
      %p45 = por %p43, %p44
      %p47 = scmp.ne.s32.totalorder %s30, %s46
      %p48 = scmp.eq.s32.totalorder %s22, 0
      %p49 = por %p47, %p48
      %s51 = sadd.s32 %s50, 1
      %p54 = scmp.eq.s32.totalorder %s16, 1
      %p55 = scmp.ne.s32.totalorder %s50, %s52
      %p56 = scmp.eq.s32.totalorder %s16, 0
      %p57 = por %p55, %p56
      %p58 = scmp.ne.s32.totalorder %s50, %s52
      %p59 = scmp.eq.s32.totalorder %s21, 1
      %p60 = por %p58, %p59
      %p61 = scmp.ne.s32.totalorder %s52, %s53
      %p62 = scmp.eq.s32.totalorder %s21, 0
      %p63 = por %p61, %p62
      %p64 = scmp.ne.s32.totalorder %s52, %s53
      %p65 = scmp.eq.s32.totalorder %s22, 1
      %p66 = por %p64, %p65
      %p68 = scmp.ne.s32.totalorder %s53, %s67
      %p69 = scmp.eq.s32.totalorder %s22, 0
      %p70 = por %p68, %p69
      %s72 = sadd.s32 %s71, 1
      %p75 = scmp.eq.s32.totalorder %s16, 1
      %p76 = scmp.ne.s32.totalorder %s71, %s73
      %p77 = scmp.eq.s32.totalorder %s16, 0
      %p78 = por %p76, %p77
      %p79 = scmp.ne.s32.totalorder %s71, %s73
      %p80 = scmp.eq.s32.totalorder %s21, 1
      %p81 = por %p79, %p80
      %p82 = scmp.ne.s32.totalorder %s73, %s74
      %p83 = scmp.eq.s32.totalorder %s21, 0
      %p84 = por %p82, %p83
      %p85 = scmp.ne.s32.totalorder %s73, %s74
      %p86 = scmp.eq.s32.totalorder %s22, 1
      %p87 = por %p85, %p86
      %p89 = scmp.ne.s32.totalorder %s74, %s88
      %p90 = scmp.eq.s32.totalorder %s22, 0
      %p91 = por %p89, %p90
      %s92 = ssub.s32 %s16, %s23
      %p93 = scmp.eq.s32.totalorder %s92, 0
      %s95 = sadd.s32 %s94, 1
      %s96 = scalar_select %p93, %s94, %s95
      %p99 = pneg %p93
      %p100 = scmp.eq.s32.totalorder %s16, 1
      %p101 = por %p99, %p100
      %p102 = scmp.ne.s32.totalorder %s94, %s97
      %p103 = scmp.eq.s32.totalorder %s16, 0
      %p104 = por %p102, %p103
      %p105 = scmp.ne.s32.totalorder %s94, %s97
      %p106 = scmp.eq.s32.totalorder %s21, 1
      %p107 = por %p105, %p106
      %p108 = scmp.ne.s32.totalorder %s97, %s98
      %p109 = scmp.eq.s32.totalorder %s21, 0
      %p110 = por %p108, %p109
      %p111 = scmp.ne.s32.totalorder %s97, %s98
      %p112 = scmp.eq.s32.totalorder %s22, 1
      %p113 = por %p111, %p112
      %p115 = scmp.ne.s32.totalorder %s98, %s114
      %p116 = scmp.eq.s32.totalorder %s22, 0
      %p117 = por %p115, %p116
      %p118 = scmp.le.s32.totalorder 1, %s16
      %p119 = scmp.lt.s32.totalorder %s16, 3
      %p120 = pnand %p118, %p119
      %p121 = pneg %p120
      // Predicated region
      $region9: #{tpu_custom_call.1} parent=5 // pred_check
        _
      $region10: #{tpu_custom_call.1} parent=5 // pred_check_branch
        %123 = sbr.rel (%p120) target = $region12
      $region11: #{tpu_custom_call.1} parent=5 // pred_region
        %s124 = ssub.s32 %s16, 1
        // Predicated region
        $region13: #{tpu_custom_call.1} parent=11 // pred_check
          %p125 = pneg %p63
        $region14: #{tpu_custom_call.1} parent=11 // pred_check_branch
          %127 = sbr.rel (%p125) target = $region16
        $region15: #{tpu_custom_call.1} parent=11 // pred_region
          %s129 = ssub.s32 64, 64
          %130 = vsyncadd [#allocation6], %s129
          %s132 = sshll.u32 [#allocation5], 4
          %s133 = int_to_ptr.vmem [resolvable:$true] %s132
          %135 = dma.hbm_to_vmem [thread:$0]  %s1, 64, %s133, [#allocation6]
        $region16: #{tpu_custom_call.1} parent=11 // pred_fallthru
          _
        // Predicated region
        $region17: #{tpu_custom_call.1} parent=11 // pred_check
          %p136 = pneg %p84
        $region18: #{tpu_custom_call.1} parent=11 // pred_check_branch
          %138 = sbr.rel (%p136) target = $region20
        $region19: #{tpu_custom_call.1} parent=11 // pred_region
          _
        $region20: #{tpu_custom_call.1} parent=11 // pred_fallthru
          _
      $region12: #{tpu_custom_call.1} parent=5 // pred_fallthru
        _
      %p139 = scmp.lt.s32.totalorder %s16, 2
      // Predicated region
      $region21: #{tpu_custom_call.1} parent=5 // pred_check
        %p140 = pneg %p139
      $region22: #{tpu_custom_call.1} parent=5 // pred_check_branch
        %142 = sbr.rel (%p140) target = $region24
      $region23: #{tpu_custom_call.1} parent=5 // pred_region
        // Predicated region
        $region25: #{tpu_custom_call.1} parent=23 // pred_check
          %p143 = pneg %p36
        $region26: #{tpu_custom_call.1} parent=23 // pred_check_branch
          %145 = sbr.rel (%p143) target = $region28
        $region27: #{tpu_custom_call.1} parent=23 // pred_region
          %s146 = sand.u32 %s26, 1
          %s147 = scalar_lea.sflag [#allocation3], %s146
          %s148 = sand.u32 %s26, 1
          %s149 = smul.addr %s148, 4
          %s150 = scalar_lea.vmem [#allocation2], %s149
          %s152 = ssub.s32 64, 64
          %153 = vsyncadd %s147, %s152
          %s154 = smul.addr %s16, 64
          %s155 = scalar_lea.hbm %s0, %s154
          %s157 = sshll.u32 %s150, 4
          %s158 = int_to_ptr.vmem [resolvable:$true] %s157
          %160 = dma.hbm_to_vmem [thread:$0]  %s155, 64, %s158, %s147
        $region28: #{tpu_custom_call.1} parent=23 // pred_fallthru
          _
      $region24: #{tpu_custom_call.1} parent=5 // pred_fallthru
        _
      %p161 = scmp.le.s32.totalorder 1, %s16
      %p162 = scmp.lt.s32.totalorder %s16, 3
      %p163 = pnand %p161, %p162
      %p164 = pneg %p163
      // Predicated region
      $region29: #{tpu_custom_call.1} parent=5 // pred_check
        _
      $region30: #{tpu_custom_call.1} parent=5 // pred_check_branch
        %166 = sbr.rel (%p163) target = $region32
      $region31: #{tpu_custom_call.1} parent=5 // pred_region
        %s167 = ssub.s32 %s16, 1
        %s168 = sand.u32 %s29, 1
        %s169 = scalar_lea.sflag [#allocation3], %s168
        %s170 = sand.u32 %s29, 1
        %s171 = smul.addr %s170, 4
        %s172 = scalar_lea.vmem [#allocation2], %s171
        // Predicated region
        $region33: #{tpu_custom_call.1} parent=31 // pred_check
          %p173 = pneg %p42
        $region34: #{tpu_custom_call.1} parent=31 // pred_check_branch
          %175 = sbr.rel (%p173) target = $region36
        $region35: #{tpu_custom_call.1} parent=31 // pred_region
          %176 = dma.done %s169, 64
        $region36: #{tpu_custom_call.1} parent=31 // pred_fallthru
          _
        // Predicated region
        $region37: #{tpu_custom_call.1} parent=31 // pred_check
          %p177 = pneg %p63
        $region38: #{tpu_custom_call.1} parent=31 // pred_check_branch
          %179 = sbr.rel (%p177) target = $region40
        $region39: #{tpu_custom_call.1} parent=31 // pred_region
          %180 = dma.done [#allocation6], 64
        $region40: #{tpu_custom_call.1} parent=31 // pred_fallthru
          _
        %s181 = sand.u32 %s29, 1
        %s182 = scalar_lea.sflag [#allocation3], %s181
        %s183 = sand.u32 %s29, 1
        %s184 = smul.addr %s183, 4
        %s185 = scalar_lea.vmem [#allocation2], %s184
        %p186 = pneg %p42
        %p187 = pneg %p39
        %p188 = pneg %p63
        %p189 = pneg %p60
        %p190 = pneg %p84
        %p191 = pneg %p81
        %p192 = pneg %p110
        %p193 = pneg %p107
        %s194 = sand.u32 %s97, 1
        %s195 = scalar_lea.sflag [#allocation4], %s194
        %s196 = sand.u32 %s97, 1
        %s197 = smul.addr %s196, 4
        %s198 = scalar_lea.vmem [#allocation7], %s197
        %v199 = vld [vmem:[%s172] sm:$0xf]
        %vm200 = vcmask 125952
        %v201 = vsel %vm200, %v199, 0.0
        %202 = vadd.xlane.f32.xlu0 %v201
        %v203 = vpop.xlane.xlu0 %202
        %v204 = vmul.f32 %v203, 0.0625
        %v205 = vld [vmem:[#allocation5] sm:$0xf]
        %v206 = vld [vmem:[%s2] sm:$0x1]
        %v208 = vlaneseq
        %v209 = vand.u32 %v208, 127
        %v210 = vlaneseq
        %v211 = vshrl.u32 %v210, 7
        %v212 = vsub.s32 %v209, %v211
        %v213 = vrot.slane %v204, %v212
        %vm214 = vcmask 31744
        %v215 = vsel %vm214, %v213, 0
        %vm217 = vcmask 1043456
        %v219 = vsel %vm217, %v205, 0
        %221 = vmatprep.subr.mxu0 0.0
        %222 = vmatpush1.msra.mxu0 0.0
        %223 = vmatprep.subr.mxu0 0.0
        %224 = vmatpush1.msra.mxu0 0.0
        %225 = vmatprep.subr.mxu0 0.0
        %226 = vmatpush1.msra.mxu0 0.0
        %227 = vmatprep.subr.mxu0 0.0
        %228 = vmatpush1.msra.mxu0 0.0
        %229 = vmatprep.subr.mxu0 0.0
        %230 = vmatpush1.msra.mxu0 0.0
        %231 = vmatprep.subr.mxu0 0.0
        %232 = vmatpush1.msra.mxu0 0.0
        %233 = vmatprep.subr.mxu0 0.0
        %234 = vmatpush1.msra.mxu0 0.0
        %235 = vmatprep.subr.mxu0 0.0
        %236 = vmatpush1.msra.mxu0 0.0
        %237 = vmatprep.subr.mxu0 0.0
        %238 = vmatpush1.msra.mxu0 0.0
        %239 = vmatprep.subr.mxu0 0.0
        %240 = vmatpush1.msra.mxu0 0.0
        %241 = vmatprep.subr.mxu0 0.0
        %242 = vmatpush1.msra.mxu0 0.0
        %243 = vmatprep.subr.mxu0 0.0
        %244 = vmatpush1.msra.mxu0 0.0
        %245 = vmatprep.subr.mxu0 0.0
        %246 = vmatpush1.msra.mxu0 0.0
        %247 = vmatprep.subr.mxu0 0.0
        %248 = vmatpush1.msra.mxu0 0.0
        %249 = vmatprep.subr.mxu0 0.0
        %250 = vmatpush1.msra.mxu0 0.0
        %251 = vmatprep.subr.mxu0 0.0
        %252 = vmatpush1.msra.mxu0 %v219
        %253 = vmatprep.subr.mxu0 0.0
        %254 = vmatpush2.msra.mxu0 0.0
        %255 = vmatprep.subr.mxu0 0.0
        %256 = vmatpush2.msra.mxu0 0.0
        %257 = vmatprep.subr.mxu0 0.0
        %258 = vmatpush2.msra.mxu0 0.0
        %259 = vmatprep.subr.mxu0 0.0
        %260 = vmatpush2.msra.mxu0 0.0
        %261 = vmatprep.subr.mxu0 0.0
        %262 = vmatpush2.msra.mxu0 0.0
        %263 = vmatprep.subr.mxu0 0.0
        %264 = vmatpush2.msra.mxu0 0.0
        %265 = vmatprep.subr.mxu0 0.0
        %266 = vmatpush2.msra.mxu0 0.0
        %267 = vmatprep.subr.mxu0 0.0
        %268 = vmatpush2.msra.mxu0 0.0
        %269 = vmatprep.subr.mxu0 0.0
        %270 = vmatpush2.msra.mxu0 0.0
        %271 = vmatprep.subr.mxu0 0.0
        %272 = vmatpush2.msra.mxu0 0.0
        %273 = vmatprep.subr.mxu0 0.0
        %274 = vmatpush2.msra.mxu0 0.0
        %275 = vmatprep.subr.mxu0 0.0
        %276 = vmatpush2.msra.mxu0 0.0
        %277 = vmatprep.subr.mxu0 0.0
        %278 = vmatpush2.msra.mxu0 0.0
        %279 = vmatprep.subr.mxu0 0.0
        %280 = vmatpush2.msra.mxu0 0.0
        %281 = vmatprep.subr.mxu0 0.0
        %282 = vmatpush2.msra.mxu0 0.0
        %283 = vmatprep.subr.mxu0 0.0
        %284 = vmatpush2.msra.mxu0 0.0
        %285 = vmatprep.mubr.f32.mxu0 0.0
        %286 = vmatmul.mubr.f32.gmra.mxu0 %v215
        %v287 = vpop.f32.mrf.mxu0
        %v288 = vadd.f32 %v206, %v287
        %v289 = vpop.f32.mrf.mxu0
        %290 = vdwg.mxu0
        %v291 = vxor.u32 %v288, 2147483648
        %v292 = vmul.f32 %v291, 1.442695
        %v293 = vpow.pop %v292
        %v294 = vadd.f32 %v293, 1.0
        %v295 = vrcp.pop %v294
        %v296 = vmul.f32 1.0, %v295
        %v297 = vlaneseq
        %v298 = vshrl.u32 %v297, 7
        %v299 = vsub.s32 0, %v298
        %v300 = vrot.slane %v296, %v299
        %302 = vbcast.lane.b32.xlu0 %v300, 256
        %v303 = vpop.permute.xlu0 %302
        %v304 = vmul.f32 %v199, %v303
        %v305 = vadd.f32 %v304, %v303
        %306 = vst.msk [vmem:[%s198] sm:$0xf] %vm200, %v305
        %s307 = sand.u32 %s97, 1
        %s308 = scalar_lea.sflag [#allocation4], %s307
        %s309 = sand.u32 %s97, 1
        %s310 = smul.addr %s309, 4
        %s311 = scalar_lea.vmem [#allocation7], %s310
        // Predicated region
        $region41: #{tpu_custom_call.1} parent=31 // pred_check
          %p312 = pneg %p107
        $region42: #{tpu_custom_call.1} parent=31 // pred_check_branch
          %314 = sbr.rel (%p312) target = $region44
        $region43: #{tpu_custom_call.1} parent=31 // pred_region
          %s316 = ssub.s32 64, 64
          %317 = vsyncadd %s308, %s316
          %s318 = smul.addr %s21, 64
          %s319 = scalar_lea.hbm %s3, %s318
          %s321 = sshll.u32 %s311, 4
          %s322 = int_to_ptr.vmem [resolvable:$true] %s321
          %324 = dma.vmem_to_hbm [thread:$0]  %s322, 64, %s319, %s308
        $region44: #{tpu_custom_call.1} parent=31 // pred_fallthru
          _
      $region32: #{tpu_custom_call.1} parent=5 // pred_fallthru
        _
      %p325 = scmp.le.s32.totalorder 2, %s16
      // Predicated region
      $region45: #{tpu_custom_call.1} parent=5 // pred_check
        %p326 = pneg %p325
      $region46: #{tpu_custom_call.1} parent=5 // pred_check_branch
        %328 = sbr.rel (%p326) target = $region48
      $region47: #{tpu_custom_call.1} parent=5 // pred_region
        %s329 = ssub.s32 %s16, 2
        // Predicated region
        $region49: #{tpu_custom_call.1} parent=47 // pred_check
          %p330 = pneg %p113
        $region50: #{tpu_custom_call.1} parent=47 // pred_check_branch
          %332 = sbr.rel (%p330) target = $region52
        $region51: #{tpu_custom_call.1} parent=47 // pred_region
          %s333 = sand.u32 %s98, 1
          %s334 = scalar_lea.sflag [#allocation4], %s333
          %s335 = sand.u32 %s98, 1
          %s336 = smul.addr %s335, 4
          %s337 = scalar_lea.vmem [#allocation7], %s336
          %338 = dma.done %s334, 64
        $region52: #{tpu_custom_call.1} parent=47 // pred_fallthru
          _
      $region48: #{tpu_custom_call.1} parent=5 // pred_fallthru
        _
    $region6: #{tpu_custom_call.1} parent=1 // loop_footer
      %s20 = sadd.s32 1, %s16
    $region7: #{tpu_custom_call.1} parent=1 // loop_footer_branch
      %15 = sbr.rel target = $region3
    $region8: #{tpu_custom_call.1} parent=1 // loop_exit
      _
    %339 = vsyncpa [#allocation3], 1
    %s340 = scalar_lea.sflag [#allocation3], 1
    %341 = vsyncpa %s340, 1
    %342 = vsyncpa [#allocation6], 1
    %343 = vsyncpa [#allocation4], 1
    %s344 = scalar_lea.sflag [#allocation4], 1
    %345 = vsyncpa %s344, 1

</llo_original>
